<compile_context>
chip_gen: v5e
topology: v5e:2x2
jax: 0.10.0
libtpu: 0.0.40
codegen_flags: <defaults>
</compile_context>

<pallas_src>
import functools

import jax
import jax.numpy as jnp
from jax import lax
from jax.experimental import pallas as pl
from jax.experimental.pallas import tpu as pltpu


def _attention_kernel(x_ref, w_ref, b_ref, o_ref, *, dim_qkv):
    # Per grid step (one batch element):
    #   x_ref: (S, D_in)   w_ref: (D_in, 3*d_qkv)   b_ref: (1, 3*d_qkv)   o_ref: (S, d_qkv)
    scale = dim_qkv ** -0.5

    # Fused Q/K/V projection: one MXU matmul.  f32 in, f32 accumulate (default MXU precision);
    # cast x/w to bf16 here if this is ever scaled up on v6e/v7x (halves input DMA bytes).
    qkv = jnp.dot(x_ref[...], w_ref[...],
                  preferred_element_type=jnp.float32) + b_ref[...]        # (S, 3*d_qkv)

    # Single lane-slice extraction per grid step (no per-batch re-extraction).
    q = qkv[:, 0:dim_qkv]
    k = qkv[:, dim_qkv:2 * dim_qkv]
    v = qkv[:, 2 * dim_qkv:3 * dim_qkv]

    # scores = q @ k^T without materializing a transpose: contract the last axes.
    scores = lax.dot_general(q, k, (((1,), (1,)), ((), ())),
                             preferred_element_type=jnp.float32) * scale   # (S, S)

    # Numerically stable softmax over keys; exact normalization for parity with the reference.
    m = jnp.max(scores, axis=-1, keepdims=True)
    p = jnp.exp(scores - m)
    p = p / jnp.sum(p, axis=-1, keepdims=True)

    # One store per grid step.
    o_ref[...] = jnp.dot(p, v, preferred_element_type=jnp.float32).astype(o_ref.dtype)


def fuse_qkv_params(wq, bq, wk, bk, wv, bv):
    """Pre-fuse the three projections once, outside the per-call hot path."""
    w_fused = jnp.concatenate([wq, wk, wv], axis=1)          # (D_in, 3*d_qkv)
    b_fused = jnp.concatenate([bq, bk, bv]).reshape(1, -1)   # (1, 3*d_qkv)
    return w_fused, b_fused


@functools.partial(jax.jit, static_argnames=("dim_qkv",))
def attention_head_single(x, w_fused, b_fused, *, dim_qkv):
    """x: (B, S, D_in) f32.  w_fused: (D_in, 3*d_qkv).  b_fused: (1, 3*d_qkv)."""
    B, S, D_in = x.shape

    kernel = functools.partial(_attention_kernel, dim_qkv=dim_qkv)

    return pl.pallas_call(
        kernel,
        out_shape=jax.ShapeDtypeStruct((B, S, dim_qkv), jnp.float32),
        grid=(B,),
        in_specs=[
            # One batch element per grid step (batch dim squeezed out of the kernel view).
            pl.BlockSpec((None, S, D_in), lambda b: (b, 0, 0)),
            # Weights/bias pinned to block (0, 0): DMA'd once, resident across the batch axis.
            pl.BlockSpec((D_in, 3 * dim_qkv), lambda b: (0, 0)),
            pl.BlockSpec((1, 3 * dim_qkv), lambda b: (0, 0)),
        ],
        out_specs=pl.BlockSpec((None, S, dim_qkv), lambda b: (b, 0, 0)),
        compiler_params=pltpu.CompilerParams(
            # Batch axis is independent -> shards across the 2 TensorCores on v7x,
            # plain sequential loop (no-op) on v5e/v6e.
            dimension_semantics=("parallel",)),
    )(x, w_fused, b_fused)


def _reference(x, wq, bq, wk, bk, wv, bv, dim_qkv):
    q = jnp.einsum("bsd,de->bse", x, wq) + bq
    k = jnp.einsum("bsd,de->bse", x, wk) + bk
    v = jnp.einsum("bsd,de->bse", x, wv) + bv
    s = jnp.einsum("bqe,bke->bqk", q, k) / (dim_qkv ** 0.5)
    p = jax.nn.softmax(s, axis=-1)
    return jnp.einsum("bqk,bke->bqe", p, v)


if __name__ == "__main__":
    # Small shapes consistent with the module: batch=2, seq=8, dim_input=32, dim_qkv=16
    B, S, D_IN, D_QKV = 2, 8, 32, 16

    key = jax.random.PRNGKey(0)
    kx, kq, kbq, kk, kbk, kv, kbv = jax.random.split(key, 7)

    x = jax.random.normal(kx, (B, S, D_IN), dtype=jnp.float32)

    # Deterministic parameter init (uniform, roughly matching nn.Linear's scale)
    bound = 1.0 / (D_IN ** 0.5)
    wq = jax.random.uniform(kq, (D_IN, D_QKV), jnp.float32, -bound, bound)
    bq = jax.random.uniform(kbq, (D_QKV,), jnp.float32, -bound, bound)
    wk = jax.random.uniform(kk, (D_IN, D_QKV), jnp.float32, -bound, bound)
    bk = jax.random.uniform(kbk, (D_QKV,), jnp.float32, -bound, bound)
    wv = jax.random.uniform(kv, (D_IN, D_QKV), jnp.float32, -bound, bound)
    bv = jax.random.uniform(kbv, (D_QKV,), jnp.float32, -bound, bound)

    # Parameter fusion happens once, outside the call path.
    w_fused, b_fused = fuse_qkv_params(wq, bq, wk, bk, wv, bv)
    w_fused, b_fused = jax.block_until_ready((w_fused, b_fused))

    out = attention_head_single(x, w_fused, b_fused, dim_qkv=D_QKV)
    out = jax.block_until_ready(out)

    ref = _reference(x, wq, bq, wk, bk, wv, bv, D_QKV)
    assert out.shape == (B, S, D_QKV)
    # Exact softmax normalization -> tight tolerance (residual diff is MXU accumulation order).
    assert jnp.allclose(out, ref, atol=2e-3, rtol=2e-3)

    print("KERNEL_OK")
</pallas_src>

<mosaic_0001>
module attributes {stable_mosaic.version = 11 : i64} {
  func.func @_attention_kernel(%arg0: i32, %arg1: memref<1x8x32xf32, #tpu.memory_space<vmem>>, %arg2: memref<32x48xf32, #tpu.memory_space<vmem>>, %arg3: memref<1x48xf32, #tpu.memory_space<vmem>>, %arg4: memref<1x8x16xf32, #tpu.memory_space<vmem>>) attributes {dimension_semantics = [#tpu.dimension_semantics<parallel>], iteration_bounds = array<i64: 2>, scalar_prefetch = 0 : i64, scratch_operands = 0 : i64, tpu.core_type = #tpu.core_type<tc>, window_params = [{transform_indices = @transform_0, window_bounds = array<i64: 1, 8, 32>}, {pipeline_mode = #tpu.pipeline_mode<synchronous>, transform_indices = @transform_1, window_bounds = array<i64: 32, 48>}, {pipeline_mode = #tpu.pipeline_mode<synchronous>, transform_indices = @transform_2, window_bounds = array<i64: 1, 48>}, {transform_indices = @transform_3, window_bounds = array<i64: 1, 8, 16>}]} {
    %c0 = arith.constant 0 : index
    %c0_0 = arith.constant 0 : index
    %c0_1 = arith.constant 0 : index
    %0 = vector.load %arg1[%c0, %c0_0, %c0_1] : memref<1x8x32xf32, #tpu.memory_space<vmem>>, vector<1x8x32xf32>
    %1 = vector.shape_cast %0 : vector<1x8x32xf32> to vector<8x32xf32>
    %c0_2 = arith.constant 0 : index
    %c0_3 = arith.constant 0 : index
    %2 = vector.load %arg2[%c0_2, %c0_3] : memref<32x48xf32, #tpu.memory_space<vmem>>, vector<32x48xf32>
    %cst = arith.constant dense<0.000000e+00> : vector<8x48xf32>
    %3 = tpu.matmul %1, %2, %cst {dimension_numbers = #tpu.dot_dimension_numbers<[1], [0], [0], [1], [0, 0, 1, 1], [], []>} : vector<8x32xf32>, vector<32x48xf32>, vector<8x48xf32> -> vector<8x48xf32>
    %c0_4 = arith.constant 0 : index
    %c0_5 = arith.constant 0 : index
    %4 = vector.load %arg3[%c0_4, %c0_5] : memref<1x48xf32, #tpu.memory_space<vmem>>, vector<1x48xf32>
    %5 = vector.broadcast %4 : vector<1x48xf32> to vector<8x48xf32>
    %6 = arith.addf %3, %5 : vector<8x48xf32>
    %7 = vector.extract_strided_slice %6 {offsets = [0, 0], sizes = [8, 16], strides = [1, 1]} : vector<8x48xf32> to vector<8x16xf32>
    %8 = vector.extract_strided_slice %6 {offsets = [0, 16], sizes = [8, 16], strides = [1, 1]} : vector<8x48xf32> to vector<8x16xf32>
    %9 = vector.extract_strided_slice %6 {offsets = [0, 32], sizes = [8, 16], strides = [1, 1]} : vector<8x48xf32> to vector<8x16xf32>
    %cst_6 = arith.constant dense<0.000000e+00> : vector<8x8xf32>
    %10 = tpu.matmul %7, %8, %cst_6 {dimension_numbers = #tpu.dot_dimension_numbers<[1], [1], [0], [0], [0, 0, 1, 0], [], []>} : vector<8x16xf32>, vector<8x16xf32>, vector<8x8xf32> -> vector<8x8xf32>
    %cst_7 = arith.constant 2.500000e-01 : f32
    %11 = vector.broadcast %cst_7 : f32 to vector<8x8xf32>
    %12 = arith.mulf %10, %11 : vector<8x8xf32>
    %cst_8 = arith.constant dense<0xFF800000> : vector<8xf32>
    %13 = vector.multi_reduction <maximumf>, %12, %cst_8 [1] : vector<8x8xf32> to vector<8xf32>
    %14 = vector.shape_cast %13 : vector<8xf32> to vector<8x1xf32>
    %15 = vector.broadcast %14 : vector<8x1xf32> to vector<8x8xf32>
    %16 = arith.subf %12, %15 : vector<8x8xf32>
    %17 = math.exp %16 : vector<8x8xf32>
    %cst_9 = arith.constant dense<0.000000e+00> : vector<8xf32>
    %18 = vector.multi_reduction <add>, %17, %cst_9 [1] : vector<8x8xf32> to vector<8xf32>
    %19 = vector.shape_cast %18 : vector<8xf32> to vector<8x1xf32>
    %20 = vector.broadcast %19 : vector<8x1xf32> to vector<8x8xf32>
    %21 = arith.divf %17, %20 : vector<8x8xf32>
    %cst_10 = arith.constant dense<0.000000e+00> : vector<8x16xf32>
    %22 = tpu.matmul %21, %9, %cst_10 {dimension_numbers = #tpu.dot_dimension_numbers<[1], [0], [0], [1], [0, 0, 1, 1], [], []>} : vector<8x8xf32>, vector<8x16xf32>, vector<8x16xf32> -> vector<8x16xf32>
    %c0_11 = arith.constant 0 : index
    %c0_12 = arith.constant 0 : index
    %c0_13 = arith.constant 0 : index
    %23 = vector.load %arg4[%c0_11, %c0_12, %c0_13] : memref<1x8x16xf32, #tpu.memory_space<vmem>>, vector<1x8x16xf32>
    %24 = vector.shape_cast %23 : vector<1x8x16xf32> to vector<8x16xf32>
    %25 = vector.shape_cast %22 : vector<8x16xf32> to vector<1x8x16xf32>
    tpu.vector_store %arg4[%c0_11, %c0_12, %c0_13], %25 {strides = array<i32>} : memref<1x8x16xf32, #tpu.memory_space<vmem>>, vector<1x8x16xf32>,
    return
  }
  func.func @transform_0(%arg0: i32) -> (i32, i32, i32) {
    %c0_i32 = arith.constant 0 : i32
    %c0_i32_0 = arith.constant 0 : i32
    %c0_i32_1 = arith.constant 0 : i32
    return %arg0, %c0_i32, %c0_i32_0 : i32, i32, i32
  }
  func.func @transform_1(%arg0: i32) -> (i32, i32) {
    %c0_i32 = arith.constant 0 : i32
    %c0_i32_0 = arith.constant 0 : i32
    %c0_i32_1 = arith.constant 0 : i32
    return %c0_i32, %c0_i32_0 : i32, i32
  }
  func.func @transform_2(%arg0: i32) -> (i32, i32) {
    %c0_i32 = arith.constant 0 : i32
    %c0_i32_0 = arith.constant 0 : i32
    %c0_i32_1 = arith.constant 0 : i32
    return %c0_i32, %c0_i32_0 : i32, i32
  }
  func.func @transform_3(%arg0: i32) -> (i32, i32, i32) {
    %c0_i32 = arith.constant 0 : i32
    %c0_i32_0 = arith.constant 0 : i32
    %c0_i32_1 = arith.constant 0 : i32
    return %arg0, %c0_i32, %c0_i32_0 : i32, i32, i32
  }
}

</mosaic_0001>

<llo_original>
// kernel: attention_head_single.1
$region0: #{attention_head_single.1}
  #allocation0 [shape = 'u32[]', space=smem, size = 0x4, offset = 0x4, fixed_abs, tag = 'smem constant byte address 0x4 - core index']
  #allocation1 [shape = 'u32[72,128]{1,0:T(1,128)}', space=vmem, size = 0x9000, scoped, tag = 'internal scratch']
  %s0 = inlined_call_operand.hbm [shape: f32[2,8,32], index: 0, kind: input, shape index: {}]
  %s1 = inlined_call_operand.hbm [shape: f32[32,48], index: 1, kind: input, shape index: {}]
  %s2 = inlined_call_operand.vmem [shape: f32[1,48], index: 2, kind: input, shape index: {}]
  %s3 = inlined_call_operand.hbm [shape: f32[2,8,16], index: 3, kind: output, shape index: {}]
  %s4 = sld [smem:[#allocation0]]
  $region53: #{attention_head_single.1} parent=0
    _
  %s6 = ssub.s32 1, %s4
  %s7 = scalar_select 0, %s6, %s4
  $region1: #{attention_head_single.1} parent=0
    #allocation2 [shape = 'u8[8192]{0}', space=vmem, size = 0x2000, scoped, tag = 'input window, operand 0']
    #allocation3 [shape = 's32[2]{0}', space=sflag, size = 0x8, scoped, tag = 'scoped memory for attention_head_single.1']
    #allocation4 [shape = 's32[2]{0}', space=sflag, size = 0x8, scoped, tag = 'scoped memory for attention_head_single.1']
    #allocation5 [shape = 'u8[16384]{0}', space=vmem, size = 0x4000, scoped, tag = 'input window, operand 1, single buffered']
    #allocation6 [shape = 's32[1]{0}', space=sflag, size = 0x4, scoped, tag = 'scoped memory for attention_head_single.1']
    #allocation7 [shape = 'u8[8192]{0}', space=vmem, size = 0x2000, scoped, tag = 'output window, operand 0']
    %8 = vsyncpa [#allocation3], 0
    %s9 = scalar_lea.sflag [#allocation3], 1
    %10 = vsyncpa %s9, 0
    %11 = vsyncpa [#allocation6], 0
    %12 = vsyncpa [#allocation4], 0
    %s13 = scalar_lea.sflag [#allocation4], 1
    %14 = vsyncpa %s13, 0
    loop: start=0, step=1, limit=4
    $region2: #{attention_head_single.1} parent=1 // loop_pre_header
      _
    $region3: #{attention_head_single.1} parent=1 // loop_header
      %s16 = sphi 0, %s20
      %p17 = scmp.ge.s32.totalorder %s16, 4
      %s26 = sphi 0, %s28
      %s29 = sphi 0, %s26
      %s30 = sphi 0, %s29
      %s46 = sphi 0, %s30
      %s50 = sphi 0, %s50
      %s52 = sphi 0, %s50
      %s53 = sphi 0, %s52
      %s67 = sphi 0, %s53
      %s71 = sphi 0, %s71
      %s73 = sphi 0, %s71
      %s74 = sphi 0, %s73
      %s88 = sphi 0, %s74
      %s94 = sphi 0, %s96
      %s97 = sphi 0, %s94
      %s98 = sphi 0, %s97
      %s114 = sphi 0, %s98
    $region4: #{attention_head_single.1} parent=1 // loop_header_branch
      %19 = sbr.rel (%p17) target = $region8
    $region5: #{attention_head_single.1} parent=1 // loop_body
      %s21 = ssub.s32 %s16, 1
      %s22 = ssub.s32 %s16, 2
      %s23 = sadd.s32 %s16, 1
      %s24 = ssub.s32 %s16, %s23
      %p25 = scmp.eq.s32.totalorder %s24, 0
      %s27 = sadd.s32 %s26, 1
      %s28 = scalar_select %p25, %s26, %s27
      %p31 = pneg %p25
      %p32 = scmp.eq.s32.totalorder %s16, 1
      %p33 = por %p31, %p32
      %p34 = scmp.ne.s32.totalorder %s26, %s29
      %p35 = scmp.eq.s32.totalorder %s16, 0
      %p36 = por %p34, %p35
      %p37 = scmp.ne.s32.totalorder %s26, %s29
      %p38 = scmp.eq.s32.totalorder %s21, 1
      %p39 = por %p37, %p38
      %p40 = scmp.ne.s32.totalorder %s29, %s30
      %p41 = scmp.eq.s32.totalorder %s21, 0
      %p42 = por %p40, %p41
      %p43 = scmp.ne.s32.totalorder %s29, %s30
      %p44 = scmp.eq.s32.totalorder %s22, 1
      %p45 = por %p43, %p44
      %p47 = scmp.ne.s32.totalorder %s30, %s46
      %p48 = scmp.eq.s32.totalorder %s22, 0
      %p49 = por %p47, %p48
      %s51 = sadd.s32 %s50, 1
      %p54 = scmp.eq.s32.totalorder %s16, 1
      %p55 = scmp.ne.s32.totalorder %s50, %s52
      %p56 = scmp.eq.s32.totalorder %s16, 0
      %p57 = por %p55, %p56
      %p58 = scmp.ne.s32.totalorder %s50, %s52
      %p59 = scmp.eq.s32.totalorder %s21, 1
      %p60 = por %p58, %p59
      %p61 = scmp.ne.s32.totalorder %s52, %s53
      %p62 = scmp.eq.s32.totalorder %s21, 0
      %p63 = por %p61, %p62
      %p64 = scmp.ne.s32.totalorder %s52, %s53
      %p65 = scmp.eq.s32.totalorder %s22, 1
      %p66 = por %p64, %p65
      %p68 = scmp.ne.s32.totalorder %s53, %s67
      %p69 = scmp.eq.s32.totalorder %s22, 0
      %p70 = por %p68, %p69
      %s72 = sadd.s32 %s71, 1
      %p75 = scmp.eq.s32.totalorder %s16, 1
      %p76 = scmp.ne.s32.totalorder %s71, %s73
      %p77 = scmp.eq.s32.totalorder %s16, 0
      %p78 = por %p76, %p77
      %p79 = scmp.ne.s32.totalorder %s71, %s73
      %p80 = scmp.eq.s32.totalorder %s21, 1
      %p81 = por %p79, %p80
      %p82 = scmp.ne.s32.totalorder %s73, %s74
      %p83 = scmp.eq.s32.totalorder %s21, 0
      %p84 = por %p82, %p83
      %p85 = scmp.ne.s32.totalorder %s73, %s74
      %p86 = scmp.eq.s32.totalorder %s22, 1
      %p87 = por %p85, %p86
      %p89 = scmp.ne.s32.totalorder %s74, %s88
      %p90 = scmp.eq.s32.totalorder %s22, 0
      %p91 = por %p89, %p90
      %s92 = ssub.s32 %s16, %s23
      %p93 = scmp.eq.s32.totalorder %s92, 0
      %s95 = sadd.s32 %s94, 1
      %s96 = scalar_select %p93, %s94, %s95
      %p99 = pneg %p93
      %p100 = scmp.eq.s32.totalorder %s16, 1
      %p101 = por %p99, %p100
      %p102 = scmp.ne.s32.totalorder %s94, %s97
      %p103 = scmp.eq.s32.totalorder %s16, 0
      %p104 = por %p102, %p103
      %p105 = scmp.ne.s32.totalorder %s94, %s97
      %p106 = scmp.eq.s32.totalorder %s21, 1
      %p107 = por %p105, %p106
      %p108 = scmp.ne.s32.totalorder %s97, %s98
      %p109 = scmp.eq.s32.totalorder %s21, 0
      %p110 = por %p108, %p109
      %p111 = scmp.ne.s32.totalorder %s97, %s98
      %p112 = scmp.eq.s32.totalorder %s22, 1
      %p113 = por %p111, %p112
      %p115 = scmp.ne.s32.totalorder %s98, %s114
      %p116 = scmp.eq.s32.totalorder %s22, 0
      %p117 = por %p115, %p116
      %p118 = scmp.le.s32.totalorder 1, %s16
      %p119 = scmp.lt.s32.totalorder %s16, 3
      %p120 = pnand %p118, %p119
      %p121 = pneg %p120
      // Predicated region
      $region9: #{attention_head_single.1} parent=5 // pred_check
        _
      $region10: #{attention_head_single.1} parent=5 // pred_check_branch
        %123 = sbr.rel (%p120) target = $region12
      $region11: #{attention_head_single.1} parent=5 // pred_region
        %s124 = ssub.s32 %s16, 1
        // Predicated region
        $region13: #{attention_head_single.1} parent=11 // pred_check
          %p125 = pneg %p63
        $region14: #{attention_head_single.1} parent=11 // pred_check_branch
          %127 = sbr.rel (%p125) target = $region16
        $region15: #{attention_head_single.1} parent=11 // pred_region
          %129 = vsyncadd [#allocation6], 0
          %s130 = sshll.u32 %s1, 4
          %s131 = int_to_ptr.hbm [resolvable:$true] %s130
          %s132 = sshll.u32 [#allocation5], 4
          %s133 = int_to_ptr.vmem [resolvable:$true] %s132
          %138 = dma.hbm_to_vmem [thread:$0]  %s131, 512, %s133, [#allocation6], 128, 128, 8
        $region16: #{attention_head_single.1} parent=11 // pred_fallthru
          _
        // Predicated region
        $region17: #{attention_head_single.1} parent=11 // pred_check
          %p139 = pneg %p84
        $region18: #{attention_head_single.1} parent=11 // pred_check_branch
          %141 = sbr.rel (%p139) target = $region20
        $region19: #{attention_head_single.1} parent=11 // pred_region
          _
        $region20: #{attention_head_single.1} parent=11 // pred_fallthru
          _
      $region12: #{attention_head_single.1} parent=5 // pred_fallthru
        _
      %p142 = scmp.lt.s32.totalorder %s16, 2
      // Predicated region
      $region21: #{attention_head_single.1} parent=5 // pred_check
        %p143 = pneg %p142
      $region22: #{attention_head_single.1} parent=5 // pred_check_branch
        %145 = sbr.rel (%p143) target = $region24
      $region23: #{attention_head_single.1} parent=5 // pred_region
        // Predicated region
        $region25: #{attention_head_single.1} parent=23 // pred_check
          %p146 = pneg %p36
        $region26: #{attention_head_single.1} parent=23 // pred_check_branch
          %148 = sbr.rel (%p146) target = $region28
        $region27: #{attention_head_single.1} parent=23 // pred_region
          %s149 = sand.u32 %s26, 1
          %s150 = scalar_lea.sflag [#allocation3], %s149
          %s151 = sand.u32 %s26, 1
          %s152 = smul.addr %s151, 8
          %s153 = scalar_lea.vmem [#allocation2], %s152
          %155 = vsyncadd %s150, 0
          %s156 = smul.addr %s16, 8
          %s157 = scalar_lea.hbm %s0, %s156
          %s159 = sshll.u32 %s157, 4
          %s160 = int_to_ptr.hbm [resolvable:$true] %s159
          %s161 = sshll.u32 %s153, 4
          %s162 = int_to_ptr.vmem [resolvable:$true] %s161
          %164 = dma.hbm_to_vmem [thread:$0]  %s160, 128, %s162, %s150
        $region28: #{attention_head_single.1} parent=23 // pred_fallthru
          _
      $region24: #{attention_head_single.1} parent=5 // pred_fallthru
        _
      %p165 = scmp.le.s32.totalorder 1, %s16
      %p166 = scmp.lt.s32.totalorder %s16, 3
      %p167 = pnand %p165, %p166
      %p168 = pneg %p167
      // Predicated region
      $region29: #{attention_head_single.1} parent=5 // pred_check
        _
      $region30: #{attention_head_single.1} parent=5 // pred_check_branch
        %170 = sbr.rel (%p167) target = $region32
      $region31: #{attention_head_single.1} parent=5 // pred_region
        %s171 = ssub.s32 %s16, 1
        %s172 = sand.u32 %s29, 1
        %s173 = scalar_lea.sflag [#allocation3], %s172
        %s174 = sand.u32 %s29, 1
        %s175 = smul.addr %s174, 8
        %s176 = scalar_lea.vmem [#allocation2], %s175
        // Predicated region
        $region33: #{attention_head_single.1} parent=31 // pred_check
          %p177 = pneg %p42
        $region34: #{attention_head_single.1} parent=31 // pred_check_branch
          %179 = sbr.rel (%p177) target = $region36
        $region35: #{attention_head_single.1} parent=31 // pred_region
          %181 = dma.done %s173, 128
        $region36: #{attention_head_single.1} parent=31 // pred_fallthru
          _
        // Predicated region
        $region37: #{attention_head_single.1} parent=31 // pred_check
          %p182 = pneg %p63
        $region38: #{attention_head_single.1} parent=31 // pred_check_branch
          %184 = sbr.rel (%p182) target = $region40
        $region39: #{attention_head_single.1} parent=31 // pred_region
          %186 = dma.done [#allocation6], 512
        $region40: #{attention_head_single.1} parent=31 // pred_fallthru
          _
        %s187 = sand.u32 %s29, 1
        %s188 = scalar_lea.sflag [#allocation3], %s187
        %s189 = sand.u32 %s29, 1
        %s190 = smul.addr %s189, 8
        %s191 = scalar_lea.vmem [#allocation2], %s190
        %p192 = pneg %p42
        %p193 = pneg %p39
        %p194 = pneg %p63
        %p195 = pneg %p60
        %p196 = pneg %p84
        %p197 = pneg %p81
        %p198 = pneg %p110
        %p199 = pneg %p107
        %s200 = sand.u32 %s97, 1
        %s201 = scalar_lea.sflag [#allocation4], %s200
        %s202 = sand.u32 %s97, 1
        %s203 = smul.addr %s202, 8
        %s204 = scalar_lea.vmem [#allocation7], %s203
        %v205 = vld [vmem:[%s176] sm:$0xff]
        %v206 = vld [vmem:[#allocation5] sm:$0xff]
        %v207 = vld [vmem:[#allocation5 + $0x8] sm:$0xff]
        %v208 = vld [vmem:[#allocation5 + $0x10] sm:$0xff]
        %v209 = vld [vmem:[#allocation5 + $0x18] sm:$0xff]
        %v210 = vld [vmem:[%s2] sm:$0x1]
        %v212 = vperm.slane %v210, 0
        %vm214 = vcmask 261120
        %v216 = vsel %vm214, %v205, 0
        %218 = vmatpush.msra.mxu0 0.0
        %219 = vmatpush.msra.mxu0 0.0
        %220 = vmatpush.msra.mxu0 0.0
        %221 = vmatpush.msra.mxu0 0.0
        %222 = vmatpush.msra.mxu0 0.0
        %223 = vmatpush.msra.mxu0 0.0
        %224 = vmatpush.msra.mxu0 0.0
        %225 = vmatpush.msra.mxu0 0.0
        %226 = vmatpush.msra.mxu0 0.0
        %227 = vmatpush.msra.mxu0 0.0
        %228 = vmatpush.msra.mxu0 0.0
        %229 = vmatpush.msra.mxu0 0.0
        %230 = vmatpush.msra.mxu0 %v209
        %231 = vmatpush.msra.mxu0 %v208
        %232 = vmatpush.msra.mxu0 %v207
        %233 = vmatpush.msra.mxu0 %v206
        %234 = vmatmul.f32.gmra.mxu0 %v216
        %v235 = vpop.f32.mrf.mxu0
        %v236 = vadd.f32 %v212, %v235
        %237 = vdwg.mxu0
        %239 = vrot.lane.b32.xlu0 %v236, 112
        %v240 = vpop.permute.xlu0 %239
        %vm241 = vcmask 130048
        %v242 = vsel %vm241, %v236, 0
        %v244 = vsel %vm241, %v240, 0
        %246 = vmatpush.xpose.msra.mxu0 0.0
        %247 = vmatpush.xpose.msra.mxu0 0.0
        %248 = vmatpush.xpose.msra.mxu0 0.0
        %249 = vmatpush.xpose.msra.mxu0 0.0
        %250 = vmatpush.xpose.msra.mxu0 0.0
        %251 = vmatpush.xpose.msra.mxu0 0.0
        %252 = vmatpush.xpose.msra.mxu0 0.0
        %253 = vmatpush.xpose.msra.mxu0 0.0
        %254 = vmatpush.xpose.msra.mxu0 0.0
        %255 = vmatpush.xpose.msra.mxu0 0.0
        %256 = vmatpush.xpose.msra.mxu0 0.0
        %257 = vmatpush.xpose.msra.mxu0 0.0
        %258 = vmatpush.xpose.msra.mxu0 0.0
        %259 = vmatpush.xpose.msra.mxu0 0.0
        %260 = vmatpush.xpose.msra.mxu0 0.0
        %261 = vmatpush.xpose.msra.mxu0 %v244
        %262 = vmatmul.f32.gmra.mxu0 %v242
        %v263 = vpop.f32.mrf.mxu0
        %v264 = vadd.f32 0.0, %v263
        %265 = vdwg.mxu0
        %v266 = vmul.f32 %v264, 0.25
        %vm267 = vcmask 64512
        %v268 = vsel %vm267, %v266, -inf
        %269 = vmax.xlane.f32.xlu0 %v268
        %v270 = vpop.xlane.xlu0 %269
        %v271 = vsub.f32 %v266, %v270
        %v272 = vmul.f32 %v271, 1.442695
        %v273 = vpow.pop %v272
        %v274 = vsel %vm267, %v273, 0.0
        %275 = vadd.xlane.f32.xlu0 %v274
        %v276 = vpop.xlane.xlu0 %275
        %v277 = vrcp.pop %v276
        %v278 = vmul.f32 %v276, %v277
        %v279 = vsub.f32 1.0, %v278
        %v280 = vmul.f32 %v277, %v279
        %v281 = vadd.f32 %v277, %v280
        %vm282 = vweird.f32 %v276
        %vm283 = vweird.f32 %v277
        %vm284 = vmor %vm282, %vm283
        %v285 = vsel %vm284, %v277, %v281
        %v286 = vand.u32 2147483647, %v276
        %vm287 = vcmp.eq.f32.partialorder %v286, 8.507059e+37
        %v288 = vand.u32 %v276, 2147483648
        %v289 = vor.u32 1.1754944e-38, %v288
        %v290 = vsel %vm287, %v289, %v285
        %v291 = vmul.f32 %v273, %v290
        %292 = vrot.lane.b32.xlu0 %v236, 96
        %v293 = vpop.permute.xlu0 %292
        %v296 = vsel %vm267, %v291, 0
        %298 = vmatpush.msra.mxu0 0.0
        %299 = vmatpush.msra.mxu0 0.0
        %300 = vmatpush.msra.mxu0 0.0
        %301 = vmatpush.msra.mxu0 0.0
        %302 = vmatpush.msra.mxu0 0.0
        %303 = vmatpush.msra.mxu0 0.0
        %304 = vmatpush.msra.mxu0 0.0
        %305 = vmatpush.msra.mxu0 0.0
        %306 = vmatpush.msra.mxu0 0.0
        %307 = vmatpush.msra.mxu0 0.0
        %308 = vmatpush.msra.mxu0 0.0
        %309 = vmatpush.msra.mxu0 0.0
        %310 = vmatpush.msra.mxu0 0.0
        %311 = vmatpush.msra.mxu0 0.0
        %312 = vmatpush.msra.mxu0 0.0
        %313 = vmatpush.msra.mxu0 %v293
        %314 = vmatmul.f32.gmra.mxu0 %v296
        %v315 = vpop.f32.mrf.mxu0
        %v316 = vadd.f32 0.0, %v315
        %317 = vdwg.mxu0
        %318 = vst.msk [vmem:[%s204] sm:$0xff] %vm241, %v316
        %s319 = sand.u32 %s97, 1
        %s320 = scalar_lea.sflag [#allocation4], %s319
        %s321 = sand.u32 %s97, 1
        %s322 = smul.addr %s321, 8
        %s323 = scalar_lea.vmem [#allocation7], %s322
        // Predicated region
        $region41: #{attention_head_single.1} parent=31 // pred_check
          %p324 = pneg %p107
        $region42: #{attention_head_single.1} parent=31 // pred_check_branch
          %326 = sbr.rel (%p324) target = $region44
        $region43: #{attention_head_single.1} parent=31 // pred_region
          %328 = vsyncadd %s320, 0
          %s329 = smul.addr %s21, 8
          %s330 = scalar_lea.hbm %s3, %s329
          %s332 = sshll.u32 %s323, 4
          %s333 = int_to_ptr.vmem [resolvable:$true] %s332
          %s334 = sshll.u32 %s330, 4
          %s335 = int_to_ptr.hbm [resolvable:$true] %s334
          %337 = dma.vmem_to_hbm [thread:$0]  %s333, 128, %s335, %s320
        $region44: #{attention_head_single.1} parent=31 // pred_fallthru
          _
      $region32: #{attention_head_single.1} parent=5 // pred_fallthru
        _
      %p338 = scmp.le.s32.totalorder 2, %s16
      // Predicated region
      $region45: #{attention_head_single.1} parent=5 // pred_check
        %p339 = pneg %p338
      $region46: #{attention_head_single.1} parent=5 // pred_check_branch
        %341 = sbr.rel (%p339) target = $region48
      $region47: #{attention_head_single.1} parent=5 // pred_region
        %s342 = ssub.s32 %s16, 2
        // Predicated region
        $region49: #{attention_head_single.1} parent=47 // pred_check
          %p343 = pneg %p113
        $region50: #{attention_head_single.1} parent=47 // pred_check_branch
          %345 = sbr.rel (%p343) target = $region52
        $region51: #{attention_head_single.1} parent=47 // pred_region
          %s346 = sand.u32 %s98, 1
          %s347 = scalar_lea.sflag [#allocation4], %s346
          %s348 = sand.u32 %s98, 1
          %s349 = smul.addr %s348, 8
          %s350 = scalar_lea.vmem [#allocation7], %s349
          %352 = dma.done %s347, 128
        $region52: #{attention_head_single.1} parent=47 // pred_fallthru
          _
      $region48: #{attention_head_single.1} parent=5 // pred_fallthru
        _
    $region6: #{attention_head_single.1} parent=1 // loop_footer
      %s20 = sadd.s32 1, %s16
    $region7: #{attention_head_single.1} parent=1 // loop_footer_branch
      %15 = sbr.rel target = $region3
    $region8: #{attention_head_single.1} parent=1 // loop_exit
      _
    %353 = vsyncpa [#allocation3], 1
    %s354 = scalar_lea.sflag [#allocation3], 1
    %355 = vsyncpa %s354, 1
    %356 = vsyncpa [#allocation6], 1
    %357 = vsyncpa [#allocation4], 1
    %s358 = scalar_lea.sflag [#allocation4], 1
    %359 = vsyncpa %s358, 1

</llo_original>
